<compile_context>
chip_gen: v7x
topology: tpu7x:2x2x1
jax: 0.10.0
libtpu: 0.0.40
codegen_flags: <defaults>
</compile_context>

<pallas_src>
import math

import jax
import jax.numpy as jnp
from jax.experimental import pallas as pl
from jax.experimental.pallas import tpu as pltpu

# ----------------------- model hyper-parameters (small) ----------------------
S = 8          # sequence length
B = 2          # batch (power of two: mask uses xor/and)
D = 32         # d_model
H = 4          # nhead
DH = D // H    # head dim
FF = 64        # dim_feedforward
N = S * B      # flattened token count
EPS = 1e-5

assert B & (B - 1) == 0, "batch must be a power of two for the xor mask"
assert 4 * D <= 128 and FF <= 128


# ------------------------------- Pallas kernel -------------------------------
def _encoder_layer_kernel(src_ref, pos_ref, wattn_ref, w1_ref, w2_ref,
                          bias_ref, out_ref, attn_scratch):
    # Flattened tokens: row i corresponds to (seq = i // B, batch = i % B).
    x = src_ref[...]                              # (N, D) f32
    qk_in = x + pos_ref[...]                      # q = k = src + pos
    bias = bias_ref[...]                          # (8, 128) f32 slab

    # ---- fused in-projection: one (2N, D) @ (D, 4D) MXU op ------------------
    # weight slab lanes: [0:D)=wq.T*scale  [D:2D)=wk.T  [2D:3D)=wv.T  [3D:4D)=wo.T
    lhs = jnp.concatenate([qk_in, x], axis=0).astype(jnp.bfloat16)    # (2N, D)
    w_attn = wattn_ref[...]                                           # (D, 4D) bf16
    proj = jnp.dot(lhs, w_attn, preferred_element_type=jnp.float32)   # (2N, 4D)
    proj = proj + bias[0:1, :]           # row 0 = [bq*scale | bk | bv | 0]

    qk = proj[0:N, 0:2 * D]              # (N, 2D): pre-scaled q | k (from src+pos)
    v = proj[N:2 * N, 2 * D:3 * D]       # (N, D):  v (from src)

    # ---- additive mask forbidding attention across batch elements -----------
    ri = jax.lax.broadcasted_iota(jnp.int32, (N, N), 0)
    ci = jax.lax.broadcasted_iota(jnp.int32, (N, N), 1)
    neg_mask = jnp.where(((ri ^ ci) & (B - 1)) == 0, 0.0, -1e30).astype(jnp.float32)

    # ---- multi-head attention (H tiny & static -> fully unrolled) -----------
    nt_dims = (((1,), (1,)), ((), ()))   # contract last dims: q @ k^T on the MXU
    for h in range(H):
        qh = qk[:, h * DH:(h + 1) * DH].astype(jnp.bfloat16)            # (N, DH)
        kh = qk[:, D + h * DH: D + (h + 1) * DH].astype(jnp.bfloat16)   # (N, DH)
        vh = v[:, h * DH:(h + 1) * DH].astype(jnp.bfloat16)             # (N, DH)
        s = jax.lax.dot_general(qh, kh, nt_dims,
                                preferred_element_type=jnp.float32) + neg_mask
        s = s - jnp.max(s, axis=-1, keepdims=True)
        e = jnp.exp(s)
        # Exact reciprocal (every row has >= S unmasked entries -> denom >= 1).
        inv_denom = pl.reciprocal(jnp.sum(e, axis=-1, keepdims=True))
        p = (e * inv_denom).astype(jnp.bfloat16)
        # Slice-store into the (N, D) scratch at static lane offset h*DH
        # (replaces the 4-way lane concat).
        attn_scratch[:, h * DH:(h + 1) * DH] = jnp.dot(
            p, vh, preferred_element_type=jnp.float32)

    # ---- attention output projection ----------------------------------------
    attn_cat = attn_scratch[...].astype(jnp.bfloat16)                   # (N, D)
    src2 = jnp.dot(attn_cat, w_attn[:, 3 * D:4 * D],
                   preferred_element_type=jnp.float32) + bias[2:3, 0:D]

    # ---- residual + LayerNorm1 (dropout1 = identity) -------------------------
    x1 = x + src2
    mu1 = jnp.mean(x1, axis=-1, keepdims=True)
    xc1 = x1 - mu1
    var1 = jnp.mean(xc1 * xc1, axis=-1, keepdims=True)
    x1 = xc1 * jax.lax.rsqrt(var1 + EPS) * bias[4:5, 0:D] + bias[5:6, 0:D]

    # ---- feed-forward: linear2(dropout(relu(linear1(x)))), dropout = identity
    h1 = jnp.dot(x1.astype(jnp.bfloat16), w1_ref[...],
                 preferred_element_type=jnp.float32) + bias[1:2, 0:FF]
    h1 = jnp.maximum(h1, 0.0)
    h2 = jnp.dot(h1.astype(jnp.bfloat16), w2_ref[...],
                 preferred_element_type=jnp.float32) + bias[3:4, 0:D]

    # ---- residual + LayerNorm2 (dropout2 = identity) -------------------------
    x2 = x1 + h2
    mu2 = jnp.mean(x2, axis=-1, keepdims=True)
    xc2 = x2 - mu2
    var2 = jnp.mean(xc2 * xc2, axis=-1, keepdims=True)
    out = xc2 * jax.lax.rsqrt(var2 + EPS) * bias[6:7, 0:D] + bias[7:8, 0:D]

    out_ref[...] = out.astype(out_ref.dtype)


# --------------------------------- wrapper -----------------------------------
@jax.jit
def transformer_encoder_layer(src_sbd, pos_sbd, w_attn, w1t, w2t, bias):
    """src_sbd, pos_sbd: (S, B, D) float32. Returns (S, B, D)."""
    # Free reshapes (collapse/expand leading dims) — no transposes, no copies.
    src2d = src_sbd.reshape(N, D)
    pos2d = pos_sbd.reshape(N, D)

    out2d = pl.pallas_call(
        _encoder_layer_kernel,
        out_shape=jax.ShapeDtypeStruct((N, D), jnp.float32),
        # No grid / BlockSpecs: every operand is a full-array VMEM block.
        scratch_shapes=[pltpu.VMEM((N, D), jnp.float32)],
    )(src2d, pos2d, w_attn, w1t, w2t, bias)

    return out2d.reshape(S, B, D)


# -------------------------- parameter packing --------------------------------
def pack_params(in_proj_w, in_proj_b, out_proj_w, out_proj_b,
                lin1_w, lin1_b, lin2_w, lin2_b, g1, be1, g2, be2):
    """Pack the 12 PyTorch-layout params into 4 lane-dense kernel operands."""
    wq, wk, wv = in_proj_w[:D], in_proj_w[D:2 * D], in_proj_w[2 * D:]
    bq, bk, bv = in_proj_b[:D], in_proj_b[D:2 * D], in_proj_b[2 * D:]
    scale = 1.0 / math.sqrt(DH)

    # x @ W^T == x @ Wt ; 1/sqrt(head_dim) folded into the Q weight AND bias.
    w_attn = jnp.concatenate(
        [wq.T * scale, wk.T, wv.T, out_proj_w.T], axis=1).astype(jnp.bfloat16)  # (D, 4D)
    w1t = lin1_w.T.astype(jnp.bfloat16)   # (D, FF)
    w2t = lin2_w.T.astype(jnp.bfloat16)   # (FF, D)

    bias = jnp.zeros((8, 128), jnp.float32)
    bias = bias.at[0, 0:D].set(bq * scale)          # row 0: fused proj bias
    bias = bias.at[0, D:2 * D].set(bk)
    bias = bias.at[0, 2 * D:3 * D].set(bv)
    bias = bias.at[1, 0:FF].set(lin1_b)             # row 1: linear1 bias
    bias = bias.at[2, 0:D].set(out_proj_b)          # row 2: out_proj bias
    bias = bias.at[3, 0:D].set(lin2_b)              # row 3: linear2 bias
    bias = bias.at[4, 0:D].set(g1)                  # row 4: norm1 gain
    bias = bias.at[5, 0:D].set(be1)                 # row 5: norm1 bias
    bias = bias.at[6, 0:D].set(g2)                  # row 6: norm2 gain
    bias = bias.at[7, 0:D].set(be2)                 # row 7: norm2 bias
    return w_attn, w1t, w2t, bias


# ------------------------ pure-JAX reference (for check) ---------------------
def reference(src_sbd, pos_sbd, raw):
    (in_proj_w, in_proj_b, out_proj_w, out_proj_b,
     lin1_w, lin1_b, lin2_w, lin2_b, g1, be1, g2, be2) = raw
    x = jnp.transpose(src_sbd, (1, 0, 2))     # (B, S, D)
    p = jnp.transpose(pos_sbd, (1, 0, 2))
    wq, wk, wv = in_proj_w[:D], in_proj_w[D:2 * D], in_proj_w[2 * D:]
    bq, bk, bv = in_proj_b[:D], in_proj_b[D:2 * D], in_proj_b[2 * D:]

    qk = x + p
    q = qk @ wq.T + bq
    k = qk @ wk.T + bk
    v = x @ wv.T + bv

    def split(a):  # (B, S, D) -> (B, H, S, DH)
        return jnp.transpose(a.reshape(B, S, H, DH), (0, 2, 1, 3))

    qh = split(q) / math.sqrt(DH)
    kh, vh = split(k), split(v)
    scores = jnp.einsum("bhsd,bhtd->bhst", qh, kh)
    attn = jax.nn.softmax(scores, axis=-1)
    o = jnp.einsum("bhst,bhtd->bhsd", attn, vh)
    o = jnp.transpose(o, (0, 2, 1, 3)).reshape(B, S, D)
    src2 = o @ out_proj_w.T + out_proj_b

    def ln(a, g, b):
        mu = jnp.mean(a, -1, keepdims=True)
        var = jnp.mean((a - mu) ** 2, -1, keepdims=True)
        return (a - mu) * jax.lax.rsqrt(var + EPS) * g + b

    x1 = ln(x + src2, g1, be1)
    ff = jnp.maximum(x1 @ lin1_w.T + lin1_b, 0.0) @ lin2_w.T + lin2_b
    x2 = ln(x1 + ff, g2, be2)
    return jnp.transpose(x2, (1, 0, 2))


# --------------------------------- main ---------------------------------------
if __name__ == "__main__":
    key = jax.random.PRNGKey(0)
    keys = jax.random.split(key, 12)

    # Parameter init (shapes follow nn.MultiheadAttention / Linear / LayerNorm).
    in_proj_w = jax.random.normal(keys[0], (3 * D, D), jnp.float32) * 0.1   # (3E, E)
    in_proj_b = jax.random.normal(keys[1], (3 * D,), jnp.float32) * 0.1
    out_proj_w = jax.random.normal(keys[2], (D, D), jnp.float32) * 0.1
    out_proj_b = jax.random.normal(keys[3], (D,), jnp.float32) * 0.1
    lin1_w = jax.random.normal(keys[4], (FF, D), jnp.float32) * 0.1
    lin1_b = jax.random.normal(keys[5], (FF,), jnp.float32) * 0.1
    lin2_w = jax.random.normal(keys[6], (D, FF), jnp.float32) * 0.1
    lin2_b = jax.random.normal(keys[7], (D,), jnp.float32) * 0.1
    g1 = jnp.ones((D,), jnp.float32)
    be1 = jnp.zeros((D,), jnp.float32)
    g2 = jnp.ones((D,), jnp.float32)
    be2 = jnp.zeros((D,), jnp.float32)

    raw = (in_proj_w, in_proj_b, out_proj_w, out_proj_b,
           lin1_w, lin1_b, lin2_w, lin2_b, g1, be1, g2, be2)
    w_attn, w1t, w2t, bias = pack_params(*raw)

    src = jax.random.normal(keys[8], (S, B, D), jnp.float32)
    pos = jax.random.normal(keys[9], (S, B, D), jnp.float32)

    out = transformer_encoder_layer(src, pos, w_attn, w1t, w2t, bias)
    out = jax.block_until_ready(out)

    ref = reference(src, pos, raw)
    assert out.shape == (S, B, D)
    # Softmax reciprocal is exact; tolerance covers ONLY bfloat16 matmul-operand
    # rounding (accumulation is f32 via preferred_element_type).
    assert jnp.allclose(out, ref, atol=2e-2, rtol=2e-2), "mismatch vs reference"

    print("KERNEL_OK")
</pallas_src>

<mosaic_0001>
module attributes {stable_mosaic.version = 11 : i64} {
  func.func @_encoder_layer_kernel(%arg0: memref<16x32xf32, #tpu.memory_space<vmem>>, %arg1: memref<16x32xf32, #tpu.memory_space<vmem>>, %arg2: memref<32x128xbf16, #tpu.memory_space<vmem>>, %arg3: memref<32x64xbf16, #tpu.memory_space<vmem>>, %arg4: memref<64x32xbf16, #tpu.memory_space<vmem>>, %arg5: memref<8x128xf32, #tpu.memory_space<vmem>>, %arg6: memref<16x32xf32, #tpu.memory_space<vmem>>, %arg7: memref<16x32xf32, #tpu.memory_space<vmem>>) attributes {dimension_semantics = [], scalar_prefetch = 0 : i64, scratch_operands = 1 : i64, tpu.core_type = #tpu.core_type<tc>} {
    %c0 = arith.constant 0 : index
    %c0_0 = arith.constant 0 : index
    %0 = vector.load %arg0[%c0, %c0_0] : memref<16x32xf32, #tpu.memory_space<vmem>>, vector<16x32xf32>
    %c0_1 = arith.constant 0 : index
    %c0_2 = arith.constant 0 : index
    %1 = vector.load %arg1[%c0_1, %c0_2] : memref<16x32xf32, #tpu.memory_space<vmem>>, vector<16x32xf32>
    %2 = arith.addf %0, %1 : vector<16x32xf32>
    %c0_3 = arith.constant 0 : index
    %c0_4 = arith.constant 0 : index
    %3 = vector.load %arg5[%c0_3, %c0_4] : memref<8x128xf32, #tpu.memory_space<vmem>>, vector<8x128xf32>
    %4 = tpu.concatenate %2, %0 in 0 : vector<16x32xf32>, vector<16x32xf32> -> vector<32x32xf32>
    %5 = arith.truncf %4 : vector<32x32xf32> to vector<32x32xbf16>
    %c0_5 = arith.constant 0 : index
    %c0_6 = arith.constant 0 : index
    %6 = vector.load %arg2[%c0_5, %c0_6] : memref<32x128xbf16, #tpu.memory_space<vmem>>, vector<32x128xbf16>
    %cst = arith.constant dense<0.000000e+00> : vector<32x128xf32>
    %7 = tpu.matmul %5, %6, %cst {dimension_numbers = #tpu.dot_dimension_numbers<[1], [0], [0], [1], [0, 0, 1, 1], [], []>} : vector<32x32xbf16>, vector<32x128xbf16>, vector<32x128xf32> -> vector<32x128xf32>
    %8 = vector.extract_strided_slice %3 {offsets = [0, 0], sizes = [1, 128], strides = [1, 1]} : vector<8x128xf32> to vector<1x128xf32>
    %9 = vector.broadcast %8 : vector<1x128xf32> to vector<32x128xf32>
    %10 = arith.addf %7, %9 : vector<32x128xf32>
    %11 = vector.extract_strided_slice %10 {offsets = [0, 0], sizes = [16, 64], strides = [1, 1]} : vector<32x128xf32> to vector<16x64xf32>
    %12 = vector.extract_strided_slice %10 {offsets = [16, 64], sizes = [16, 32], strides = [1, 1]} : vector<32x128xf32> to vector<16x32xf32>
    %13 = tpu.iota {dimensions = array<i32: 0>} : vector<16x16xi32>
    %14 = tpu.iota {dimensions = array<i32: 1>} : vector<16x16xi32>
    %15 = arith.xori %13, %14 : vector<16x16xi32>
    %c1_i32 = arith.constant 1 : i32
    %16 = vector.broadcast %c1_i32 : i32 to vector<16x16xi32>
    %17 = arith.andi %15, %16 : vector<16x16xi32>
    %c0_i32 = arith.constant 0 : i32
    %18 = vector.broadcast %c0_i32 : i32 to vector<16x16xi32>
    %19 = arith.cmpi eq, %17, %18 : vector<16x16xi32>
    %cst_7 = arith.constant 0.000000e+00 : f32
    %cst_8 = arith.constant -1.000000e+30 : f32
    %20 = vector.broadcast %cst_7 : f32 to vector<16x16xf32>
    %21 = vector.broadcast %cst_8 : f32 to vector<16x16xf32>
    %22 = arith.select %19, %20, %21 : vector<16x16xi1>, vector<16x16xf32>
    %23 = vector.extract_strided_slice %11 {offsets = [0, 0], sizes = [16, 8], strides = [1, 1]} : vector<16x64xf32> to vector<16x8xf32>
    %24 = arith.truncf %23 : vector<16x8xf32> to vector<16x8xbf16>
    %25 = vector.extract_strided_slice %11 {offsets = [0, 32], sizes = [16, 8], strides = [1, 1]} : vector<16x64xf32> to vector<16x8xf32>
    %26 = arith.truncf %25 : vector<16x8xf32> to vector<16x8xbf16>
    %27 = vector.extract_strided_slice %12 {offsets = [0, 0], sizes = [16, 8], strides = [1, 1]} : vector<16x32xf32> to vector<16x8xf32>
    %28 = arith.truncf %27 : vector<16x8xf32> to vector<16x8xbf16>
    %cst_9 = arith.constant dense<0.000000e+00> : vector<16x16xf32>
    %29 = tpu.matmul %24, %26, %cst_9 {dimension_numbers = #tpu.dot_dimension_numbers<[1], [1], [0], [0], [0, 0, 1, 0], [], []>} : vector<16x8xbf16>, vector<16x8xbf16>, vector<16x16xf32> -> vector<16x16xf32>
    %30 = arith.addf %29, %22 : vector<16x16xf32>
    %cst_10 = arith.constant dense<0xFF800000> : vector<16xf32>
    %31 = vector.multi_reduction <maximumf>, %30, %cst_10 [1] : vector<16x16xf32> to vector<16xf32>
    %32 = vector.shape_cast %31 : vector<16xf32> to vector<16x1xf32>
    %33 = vector.broadcast %32 : vector<16x1xf32> to vector<16x16xf32>
    %34 = arith.subf %30, %33 : vector<16x16xf32>
    %35 = math.exp %34 : vector<16x16xf32>
    %cst_11 = arith.constant dense<0.000000e+00> : vector<16xf32>
    %36 = vector.multi_reduction <add>, %35, %cst_11 [1] : vector<16x16xf32> to vector<16xf32>
    %37 = vector.shape_cast %36 : vector<16xf32> to vector<16x1xf32>
    %38 = tpu.reciprocal %37 : vector<16x1xf32> -> vector<16x1xf32>
    %39 = vector.broadcast %38 : vector<16x1xf32> to vector<16x16xf32>
    %40 = arith.mulf %35, %39 : vector<16x16xf32>
    %41 = arith.truncf %40 : vector<16x16xf32> to vector<16x16xbf16>
    %cst_12 = arith.constant dense<0.000000e+00> : vector<16x8xf32>
    %42 = tpu.matmul %41, %28, %cst_12 {dimension_numbers = #tpu.dot_dimension_numbers<[1], [0], [0], [1], [0, 0, 1, 1], [], []>} : vector<16x16xbf16>, vector<16x8xbf16>, vector<16x8xf32> -> vector<16x8xf32>
    %c0_13 = arith.constant 0 : index
    %c0_14 = arith.constant 0 : index
    %43 = vector.load %arg7[%c0_13, %c0_14] : memref<16x32xf32, #tpu.memory_space<vmem>>, vector<16x8xf32>
    tpu.vector_store %arg7[%c0_13, %c0_14], %42 {strides = array<i32>} : memref<16x32xf32, #tpu.memory_space<vmem>>, vector<16x8xf32>,
    %44 = vector.extract_strided_slice %11 {offsets = [0, 8], sizes = [16, 8], strides = [1, 1]} : vector<16x64xf32> to vector<16x8xf32>
    %45 = arith.truncf %44 : vector<16x8xf32> to vector<16x8xbf16>
    %46 = vector.extract_strided_slice %11 {offsets = [0, 40], sizes = [16, 8], strides = [1, 1]} : vector<16x64xf32> to vector<16x8xf32>
    %47 = arith.truncf %46 : vector<16x8xf32> to vector<16x8xbf16>
    %48 = vector.extract_strided_slice %12 {offsets = [0, 8], sizes = [16, 8], strides = [1, 1]} : vector<16x32xf32> to vector<16x8xf32>
    %49 = arith.truncf %48 : vector<16x8xf32> to vector<16x8xbf16>
    %cst_15 = arith.constant dense<0.000000e+00> : vector<16x16xf32>
    %50 = tpu.matmul %45, %47, %cst_15 {dimension_numbers = #tpu.dot_dimension_numbers<[1], [1], [0], [0], [0, 0, 1, 0], [], []>} : vector<16x8xbf16>, vector<16x8xbf16>, vector<16x16xf32> -> vector<16x16xf32>
    %51 = arith.addf %50, %22 : vector<16x16xf32>
    %cst_16 = arith.constant dense<0xFF800000> : vector<16xf32>
    %52 = vector.multi_reduction <maximumf>, %51, %cst_16 [1] : vector<16x16xf32> to vector<16xf32>
    %53 = vector.shape_cast %52 : vector<16xf32> to vector<16x1xf32>
    %54 = vector.broadcast %53 : vector<16x1xf32> to vector<16x16xf32>
    %55 = arith.subf %51, %54 : vector<16x16xf32>
    %56 = math.exp %55 : vector<16x16xf32>
    %cst_17 = arith.constant dense<0.000000e+00> : vector<16xf32>
    %57 = vector.multi_reduction <add>, %56, %cst_17 [1] : vector<16x16xf32> to vector<16xf32>
    %58 = vector.shape_cast %57 : vector<16xf32> to vector<16x1xf32>
    %59 = tpu.reciprocal %58 : vector<16x1xf32> -> vector<16x1xf32>
    %60 = vector.broadcast %59 : vector<16x1xf32> to vector<16x16xf32>
    %61 = arith.mulf %56, %60 : vector<16x16xf32>
    %62 = arith.truncf %61 : vector<16x16xf32> to vector<16x16xbf16>
    %cst_18 = arith.constant dense<0.000000e+00> : vector<16x8xf32>
    %63 = tpu.matmul %62, %49, %cst_18 {dimension_numbers = #tpu.dot_dimension_numbers<[1], [0], [0], [1], [0, 0, 1, 1], [], []>} : vector<16x16xbf16>, vector<16x8xbf16>, vector<16x8xf32> -> vector<16x8xf32>
    %c0_19 = arith.constant 0 : index
    %c8 = arith.constant 8 : index
    %64 = vector.load %arg7[%c0_19, %c8] : memref<16x32xf32, #tpu.memory_space<vmem>>, vector<16x8xf32>
    tpu.vector_store %arg7[%c0_19, %c8], %63 {strides = array<i32>} : memref<16x32xf32, #tpu.memory_space<vmem>>, vector<16x8xf32>,
    %65 = vector.extract_strided_slice %11 {offsets = [0, 16], sizes = [16, 8], strides = [1, 1]} : vector<16x64xf32> to vector<16x8xf32>
    %66 = arith.truncf %65 : vector<16x8xf32> to vector<16x8xbf16>
    %67 = vector.extract_strided_slice %11 {offsets = [0, 48], sizes = [16, 8], strides = [1, 1]} : vector<16x64xf32> to vector<16x8xf32>
    %68 = arith.truncf %67 : vector<16x8xf32> to vector<16x8xbf16>
    %69 = vector.extract_strided_slice %12 {offsets = [0, 16], sizes = [16, 8], strides = [1, 1]} : vector<16x32xf32> to vector<16x8xf32>
    %70 = arith.truncf %69 : vector<16x8xf32> to vector<16x8xbf16>
    %cst_20 = arith.constant dense<0.000000e+00> : vector<16x16xf32>
    %71 = tpu.matmul %66, %68, %cst_20 {dimension_numbers = #tpu.dot_dimension_numbers<[1], [1], [0], [0], [0, 0, 1, 0], [], []>} : vector<16x8xbf16>, vector<16x8xbf16>, vector<16x16xf32> -> vector<16x16xf32>
    %72 = arith.addf %71, %22 : vector<16x16xf32>
    %cst_21 = arith.constant dense<0xFF800000> : vector<16xf32>
    %73 = vector.multi_reduction <maximumf>, %72, %cst_21 [1] : vector<16x16xf32> to vector<16xf32>
    %74 = vector.shape_cast %73 : vector<16xf32> to vector<16x1xf32>
    %75 = vector.broadcast %74 : vector<16x1xf32> to vector<16x16xf32>
    %76 = arith.subf %72, %75 : vector<16x16xf32>
    %77 = math.exp %76 : vector<16x16xf32>
    %cst_22 = arith.constant dense<0.000000e+00> : vector<16xf32>
    %78 = vector.multi_reduction <add>, %77, %cst_22 [1] : vector<16x16xf32> to vector<16xf32>
    %79 = vector.shape_cast %78 : vector<16xf32> to vector<16x1xf32>
    %80 = tpu.reciprocal %79 : vector<16x1xf32> -> vector<16x1xf32>
    %81 = vector.broadcast %80 : vector<16x1xf32> to vector<16x16xf32>
    %82 = arith.mulf %77, %81 : vector<16x16xf32>
    %83 = arith.truncf %82 : vector<16x16xf32> to vector<16x16xbf16>
    %cst_23 = arith.constant dense<0.000000e+00> : vector<16x8xf32>
    %84 = tpu.matmul %83, %70, %cst_23 {dimension_numbers = #tpu.dot_dimension_numbers<[1], [0], [0], [1], [0, 0, 1, 1], [], []>} : vector<16x16xbf16>, vector<16x8xbf16>, vector<16x8xf32> -> vector<16x8xf32>
    %c0_24 = arith.constant 0 : index
    %c16 = arith.constant 16 : index
    %85 = vector.load %arg7[%c0_24, %c16] : memref<16x32xf32, #tpu.memory_space<vmem>>, vector<16x8xf32>
    tpu.vector_store %arg7[%c0_24, %c16], %84 {strides = array<i32>} : memref<16x32xf32, #tpu.memory_space<vmem>>, vector<16x8xf32>,
    %86 = vector.extract_strided_slice %11 {offsets = [0, 24], sizes = [16, 8], strides = [1, 1]} : vector<16x64xf32> to vector<16x8xf32>
    %87 = arith.truncf %86 : vector<16x8xf32> to vector<16x8xbf16>
    %88 = vector.extract_strided_slice %11 {offsets = [0, 56], sizes = [16, 8], strides = [1, 1]} : vector<16x64xf32> to vector<16x8xf32>
    %89 = arith.truncf %88 : vector<16x8xf32> to vector<16x8xbf16>
    %90 = vector.extract_strided_slice %12 {offsets = [0, 24], sizes = [16, 8], strides = [1, 1]} : vector<16x32xf32> to vector<16x8xf32>
    %91 = arith.truncf %90 : vector<16x8xf32> to vector<16x8xbf16>
    %cst_25 = arith.constant dense<0.000000e+00> : vector<16x16xf32>
    %92 = tpu.matmul %87, %89, %cst_25 {dimension_numbers = #tpu.dot_dimension_numbers<[1], [1], [0], [0], [0, 0, 1, 0], [], []>} : vector<16x8xbf16>, vector<16x8xbf16>, vector<16x16xf32> -> vector<16x16xf32>
    %93 = arith.addf %92, %22 : vector<16x16xf32>
    %cst_26 = arith.constant dense<0xFF800000> : vector<16xf32>
    %94 = vector.multi_reduction <maximumf>, %93, %cst_26 [1] : vector<16x16xf32> to vector<16xf32>
    %95 = vector.shape_cast %94 : vector<16xf32> to vector<16x1xf32>
    %96 = vector.broadcast %95 : vector<16x1xf32> to vector<16x16xf32>
    %97 = arith.subf %93, %96 : vector<16x16xf32>
    %98 = math.exp %97 : vector<16x16xf32>
    %cst_27 = arith.constant dense<0.000000e+00> : vector<16xf32>
    %99 = vector.multi_reduction <add>, %98, %cst_27 [1] : vector<16x16xf32> to vector<16xf32>
    %100 = vector.shape_cast %99 : vector<16xf32> to vector<16x1xf32>
    %101 = tpu.reciprocal %100 : vector<16x1xf32> -> vector<16x1xf32>
    %102 = vector.broadcast %101 : vector<16x1xf32> to vector<16x16xf32>
    %103 = arith.mulf %98, %102 : vector<16x16xf32>
    %104 = arith.truncf %103 : vector<16x16xf32> to vector<16x16xbf16>
    %cst_28 = arith.constant dense<0.000000e+00> : vector<16x8xf32>
    %105 = tpu.matmul %104, %91, %cst_28 {dimension_numbers = #tpu.dot_dimension_numbers<[1], [0], [0], [1], [0, 0, 1, 1], [], []>} : vector<16x16xbf16>, vector<16x8xbf16>, vector<16x8xf32> -> vector<16x8xf32>
    %c0_29 = arith.constant 0 : index
    %c24 = arith.constant 24 : index
    %106 = vector.load %arg7[%c0_29, %c24] : memref<16x32xf32, #tpu.memory_space<vmem>>, vector<16x8xf32>
    tpu.vector_store %arg7[%c0_29, %c24], %105 {strides = array<i32>} : memref<16x32xf32, #tpu.memory_space<vmem>>, vector<16x8xf32>,
    %c0_30 = arith.constant 0 : index
    %c0_31 = arith.constant 0 : index
    %107 = vector.load %arg7[%c0_30, %c0_31] : memref<16x32xf32, #tpu.memory_space<vmem>>, vector<16x32xf32>
    %108 = arith.truncf %107 : vector<16x32xf32> to vector<16x32xbf16>
    %109 = vector.extract_strided_slice %6 {offsets = [0, 96], sizes = [32, 32], strides = [1, 1]} : vector<32x128xbf16> to vector<32x32xbf16>
    %cst_32 = arith.constant dense<0.000000e+00> : vector<16x32xf32>
    %110 = tpu.matmul %108, %109, %cst_32 {dimension_numbers = #tpu.dot_dimension_numbers<[1], [0], [0], [1], [0, 0, 1, 1], [], []>} : vector<16x32xbf16>, vector<32x32xbf16>, vector<16x32xf32> -> vector<16x32xf32>
    %111 = vector.extract_strided_slice %3 {offsets = [2, 0], sizes = [1, 32], strides = [1, 1]} : vector<8x128xf32> to vector<1x32xf32>
    %112 = vector.broadcast %111 : vector<1x32xf32> to vector<16x32xf32>
    %113 = arith.addf %110, %112 : vector<16x32xf32>
    %114 = arith.addf %0, %113 : vector<16x32xf32>
    %cst_33 = arith.constant dense<0.000000e+00> : vector<16xf32>
    %115 = vector.multi_reduction <add>, %114, %cst_33 [1] : vector<16x32xf32> to vector<16xf32>
    %116 = vector.shape_cast %115 : vector<16xf32> to vector<16x1xf32>
    %cst_34 = arith.constant 3.200000e+01 : f32
    %117 = vector.broadcast %cst_34 : f32 to vector<16x1xf32>
    %118 = arith.divf %116, %117 : vector<16x1xf32>
    %119 = vector.broadcast %118 : vector<16x1xf32> to vector<16x32xf32>
    %120 = arith.subf %114, %119 : vector<16x32xf32>
    %121 = arith.mulf %120, %120 : vector<16x32xf32>
    %cst_35 = arith.constant dense<0.000000e+00> : vector<16xf32>
    %122 = vector.multi_reduction <add>, %121, %cst_35 [1] : vector<16x32xf32> to vector<16xf32>
    %123 = vector.shape_cast %122 : vector<16xf32> to vector<16x1xf32>
    %cst_36 = arith.constant 3.200000e+01 : f32
    %124 = vector.broadcast %cst_36 : f32 to vector<16x1xf32>
    %125 = arith.divf %123, %124 : vector<16x1xf32>
    %cst_37 = arith.constant 9.99999974E-6 : f32
    %126 = vector.broadcast %cst_37 : f32 to vector<16x1xf32>
    %127 = arith.addf %125, %126 : vector<16x1xf32>
    %128 = math.rsqrt %127 : vector<16x1xf32>
    %129 = vector.broadcast %128 : vector<16x1xf32> to vector<16x32xf32>
    %130 = arith.mulf %120, %129 : vector<16x32xf32>
    %131 = vector.extract_strided_slice %3 {offsets = [4, 0], sizes = [1, 32], strides = [1, 1]} : vector<8x128xf32> to vector<1x32xf32>
    %132 = vector.broadcast %131 : vector<1x32xf32> to vector<16x32xf32>
    %133 = arith.mulf %130, %132 : vector<16x32xf32>
    %134 = vector.extract_strided_slice %3 {offsets = [5, 0], sizes = [1, 32], strides = [1, 1]} : vector<8x128xf32> to vector<1x32xf32>
    %135 = vector.broadcast %134 : vector<1x32xf32> to vector<16x32xf32>
    %136 = arith.addf %133, %135 : vector<16x32xf32>
    %137 = arith.truncf %136 : vector<16x32xf32> to vector<16x32xbf16>
    %c0_38 = arith.constant 0 : index
    %c0_39 = arith.constant 0 : index
    %138 = vector.load %arg3[%c0_38, %c0_39] : memref<32x64xbf16, #tpu.memory_space<vmem>>, vector<32x64xbf16>
    %cst_40 = arith.constant dense<0.000000e+00> : vector<16x64xf32>
    %139 = tpu.matmul %137, %138, %cst_40 {dimension_numbers = #tpu.dot_dimension_numbers<[1], [0], [0], [1], [0, 0, 1, 1], [], []>} : vector<16x32xbf16>, vector<32x64xbf16>, vector<16x64xf32> -> vector<16x64xf32>
    %140 = vector.extract_strided_slice %3 {offsets = [1, 0], sizes = [1, 64], strides = [1, 1]} : vector<8x128xf32> to vector<1x64xf32>
    %141 = vector.broadcast %140 : vector<1x64xf32> to vector<16x64xf32>
    %142 = arith.addf %139, %141 : vector<16x64xf32>
    %cst_41 = arith.constant 0.000000e+00 : f32
    %143 = vector.broadcast %cst_41 : f32 to vector<16x64xf32>
    %144 = arith.maximumf %142, %143 : vector<16x64xf32>
    %145 = arith.truncf %144 : vector<16x64xf32> to vector<16x64xbf16>
    %c0_42 = arith.constant 0 : index
    %c0_43 = arith.constant 0 : index
    %146 = vector.load %arg4[%c0_42, %c0_43] : memref<64x32xbf16, #tpu.memory_space<vmem>>, vector<64x32xbf16>
    %cst_44 = arith.constant dense<0.000000e+00> : vector<16x32xf32>
    %147 = tpu.matmul %145, %146, %cst_44 {dimension_numbers = #tpu.dot_dimension_numbers<[1], [0], [0], [1], [0, 0, 1, 1], [], []>} : vector<16x64xbf16>, vector<64x32xbf16>, vector<16x32xf32> -> vector<16x32xf32>
    %148 = vector.extract_strided_slice %3 {offsets = [3, 0], sizes = [1, 32], strides = [1, 1]} : vector<8x128xf32> to vector<1x32xf32>
    %149 = vector.broadcast %148 : vector<1x32xf32> to vector<16x32xf32>
    %150 = arith.addf %147, %149 : vector<16x32xf32>
    %151 = arith.addf %136, %150 : vector<16x32xf32>
    %cst_45 = arith.constant dense<0.000000e+00> : vector<16xf32>
    %152 = vector.multi_reduction <add>, %151, %cst_45 [1] : vector<16x32xf32> to vector<16xf32>
    %153 = vector.shape_cast %152 : vector<16xf32> to vector<16x1xf32>
    %cst_46 = arith.constant 3.200000e+01 : f32
    %154 = vector.broadcast %cst_46 : f32 to vector<16x1xf32>
    %155 = arith.divf %153, %154 : vector<16x1xf32>
    %156 = vector.broadcast %155 : vector<16x1xf32> to vector<16x32xf32>
    %157 = arith.subf %151, %156 : vector<16x32xf32>
    %158 = arith.mulf %157, %157 : vector<16x32xf32>
    %cst_47 = arith.constant dense<0.000000e+00> : vector<16xf32>
    %159 = vector.multi_reduction <add>, %158, %cst_47 [1] : vector<16x32xf32> to vector<16xf32>
    %160 = vector.shape_cast %159 : vector<16xf32> to vector<16x1xf32>
    %cst_48 = arith.constant 3.200000e+01 : f32
    %161 = vector.broadcast %cst_48 : f32 to vector<16x1xf32>
    %162 = arith.divf %160, %161 : vector<16x1xf32>
    %cst_49 = arith.constant 9.99999974E-6 : f32
    %163 = vector.broadcast %cst_49 : f32 to vector<16x1xf32>
    %164 = arith.addf %162, %163 : vector<16x1xf32>
    %165 = math.rsqrt %164 : vector<16x1xf32>
    %166 = vector.broadcast %165 : vector<16x1xf32> to vector<16x32xf32>
    %167 = arith.mulf %157, %166 : vector<16x32xf32>
    %168 = vector.extract_strided_slice %3 {offsets = [6, 0], sizes = [1, 32], strides = [1, 1]} : vector<8x128xf32> to vector<1x32xf32>
    %169 = vector.broadcast %168 : vector<1x32xf32> to vector<16x32xf32>
    %170 = arith.mulf %167, %169 : vector<16x32xf32>
    %171 = vector.extract_strided_slice %3 {offsets = [7, 0], sizes = [1, 32], strides = [1, 1]} : vector<8x128xf32> to vector<1x32xf32>
    %172 = vector.broadcast %171 : vector<1x32xf32> to vector<16x32xf32>
    %173 = arith.addf %170, %172 : vector<16x32xf32>
    %c0_50 = arith.constant 0 : index
    %c0_51 = arith.constant 0 : index
    %174 = vector.load %arg6[%c0_50, %c0_51] : memref<16x32xf32, #tpu.memory_space<vmem>>, vector<16x32xf32>
    tpu.vector_store %arg6[%c0_50, %c0_51], %173 {strides = array<i32>} : memref<16x32xf32, #tpu.memory_space<vmem>>, vector<16x32xf32>,
    return
  }
}

</mosaic_0001>

<llo_original>
// kernel: transformer_encoder_layer.1
$region0: #{transformer_encoder_layer.1}
  #allocation0 [shape = 'u32[]', space=smem, size = 0x4, offset = 0x4, fixed_abs, tag = 'smem constant byte address 0x4 - core index']
  #allocation1 [shape = 'u32[144,128]{1,0:T(1,128)}', space=vmem, size = 0x12000, scoped, tag = 'internal scratch']
  #allocation2 [shape = 'f32[16,32]{1,0:T(8,128)}', space=vmem, size = 0x2000, scoped, tag = 'scratch operand']
  %s0 = inlined_call_operand.vmem [shape: f32[16,32], index: 0, kind: input, shape index: {}]
  %s1 = inlined_call_operand.vmem [shape: f32[16,32], index: 1, kind: input, shape index: {}]
  %s2 = inlined_call_operand.vmem [shape: bf16[32,128], index: 2, kind: input, shape index: {}]
  %s3 = inlined_call_operand.hbm [shape: bf16[32,64], index: 3, kind: input, shape index: {}]
  %s4 = inlined_call_operand.vmem [shape: bf16[64,32], index: 4, kind: input, shape index: {}]
  %s5 = inlined_call_operand.vmem [shape: f32[8,128], index: 5, kind: input, shape index: {}]
  %s6 = inlined_call_operand.hbm [shape: f32[16,32], index: 6, kind: output, shape index: {}]
  %s7 = sld [smem:[#allocation0]]
  $region38: #{transformer_encoder_layer.1} parent=0
    _
  %s9 = ssub.s32 1, %s7
  %s10 = scalar_select 0, %s9, %s7
  $region1: #{transformer_encoder_layer.1} parent=0
    #allocation3 [shape = 'u8[8192]{0}', space=vmem, size = 0x2000, scoped, tag = 'input window, operand 3, single buffered']
    #allocation4 [shape = 's32[1]{0}', space=sflag, size = 0x4, scoped, tag = 'scoped memory for transformer_encoder_layer.1']
    #allocation5 [shape = 's32[1]{0}', space=sflag, size = 0x4, scoped, tag = 'scoped memory for transformer_encoder_layer.1']
    #allocation6 [shape = 'u8[8192]{0}', space=vmem, size = 0x2000, scoped, tag = 'output window, operand 0, single buffered']
    %11 = vsyncpa [#allocation4], 0
    %12 = vsyncpa [#allocation5], 0
    // Predicated region
    $region2: #{transformer_encoder_layer.1} parent=1 // pred_check
      _
    $region3: #{transformer_encoder_layer.1} parent=1 // pred_check_branch
      %14 = sbr.rel (0) target = $region5
    $region4: #{transformer_encoder_layer.1} parent=1 // pred_region
      _
    $region5: #{transformer_encoder_layer.1} parent=1 // pred_fallthru
      _
    // Predicated region
    $region6: #{transformer_encoder_layer.1} parent=1 // pred_check
      _
    $region7: #{transformer_encoder_layer.1} parent=1 // pred_check_branch
      %16 = sbr.rel (0) target = $region9
    $region8: #{transformer_encoder_layer.1} parent=1 // pred_region
      _
    $region9: #{transformer_encoder_layer.1} parent=1 // pred_fallthru
      _
    // Predicated region
    $region10: #{transformer_encoder_layer.1} parent=1 // pred_check
      _
    $region11: #{transformer_encoder_layer.1} parent=1 // pred_check_branch
      %18 = sbr.rel (0) target = $region13
    $region12: #{transformer_encoder_layer.1} parent=1 // pred_region
      _
    $region13: #{transformer_encoder_layer.1} parent=1 // pred_fallthru
      _
    // Predicated region
    $region14: #{transformer_encoder_layer.1} parent=1 // pred_check
      _
    $region15: #{transformer_encoder_layer.1} parent=1 // pred_check_branch
      %20 = sbr.rel (0) target = $region17
    $region16: #{transformer_encoder_layer.1} parent=1 // pred_region
      %s22 = ssub.s32 256, 256
      %23 = vsyncadd [#allocation4], %s22
      %s24 = sshll.u32 [#allocation3], 4
      %s25 = int_to_ptr.vmem [resolvable:$true] %s24
      %30 = dma.hbm_to_vmem [thread:$0]  %s3, 256, %s25, [#allocation4], 64, 64, 4
    $region17: #{transformer_encoder_layer.1} parent=1 // pred_fallthru
      _
    // Predicated region
    $region18: #{transformer_encoder_layer.1} parent=1 // pred_check
      _
    $region19: #{transformer_encoder_layer.1} parent=1 // pred_check_branch
      %32 = sbr.rel (0) target = $region21
    $region20: #{transformer_encoder_layer.1} parent=1 // pred_region
      _
    $region21: #{transformer_encoder_layer.1} parent=1 // pred_fallthru
      _
    // Predicated region
    $region22: #{transformer_encoder_layer.1} parent=1 // pred_check
      _
    $region23: #{transformer_encoder_layer.1} parent=1 // pred_check_branch
      %34 = sbr.rel (0) target = $region25
    $region24: #{transformer_encoder_layer.1} parent=1 // pred_region
      _
    $region25: #{transformer_encoder_layer.1} parent=1 // pred_fallthru
      _
    // Predicated region
    $region26: #{transformer_encoder_layer.1} parent=1 // pred_check
      _
    $region27: #{transformer_encoder_layer.1} parent=1 // pred_check_branch
      %36 = sbr.rel (0) target = $region29
    $region28: #{transformer_encoder_layer.1} parent=1 // pred_region
      %37 = dma.done [#allocation4], 256
    $region29: #{transformer_encoder_layer.1} parent=1 // pred_fallthru
      _
    %v39 = vld [vmem:[%s0] sm:$0xff]
    %v40 = vld [vmem:[%s0 + $0x8] sm:$0xff]
    %v41 = vld [vmem:[%s1] sm:$0xff]
    %v42 = vld [vmem:[%s1 + $0x8] sm:$0xff]
    %v43 = vadd.f32 %v39, %v41
    %v44 = vadd.f32 %v40, %v42
    %v45 = vld [vmem:[%s5] sm:$0xff]
    %v46 = vpack.c.bf16 %v44, %v43
    %v47 = vpack.c.bf16 %v40, %v39
    %v48 = vld [vmem:[%s2] sm:$0xf]
    %v49 = vld [vmem:[%s2 + $0x4] sm:$0xf]
    %v50 = vld [vmem:[%s2 + $0x8] sm:$0xf]
    %v51 = vld [vmem:[%s2 + $0xc] sm:$0xf]
    %v52 = vlaneseq
    %v53 = vshrl.u32 %v52, 7
    %v54 = vsub.s32 0, %v53
    %v55 = vrot.slane %v45, %v54
    %v60 = vunpack.c.l.b16 %v48
    %v61 = vunpack.c.l.b16 %v49
    %v62 = vunpack.c.l.b16 %v50
    %v63 = vunpack.c.l.b16 %v51
    %v64 = vpack.c.b16 %v61, %v60
    %v65 = vpack.c.b16 %v63, %v62
    %vm68 = vcmask 261120
    %v70 = vsel %vm68, %v46, 0
    %v73 = vsel %vm68, %v47, 0
    %75 = vmatprep.subr.bf16.mxu0 0
    %76 = vmatpush1.bf16.msra.mxu0 %v64
    %77 = vmatprep.subr.bf16.mxu0 0
    %78 = vmatpush1.bf16.msra.mxu0 %v65
    %79 = vmatprep.subr.bf16.mxu0 0
    %80 = vmatpush1.bf16.msra.mxu0 0
    %81 = vmatprep.subr.bf16.mxu0 0
    %82 = vmatpush1.bf16.msra.mxu0 0
    %83 = vmatprep.subr.bf16.mxu0 0
    %84 = vmatpush1.bf16.msra.mxu0 0
    %85 = vmatprep.subr.bf16.mxu0 0
    %86 = vmatpush1.bf16.msra.mxu0 0
    %87 = vmatprep.subr.bf16.mxu0 0
    %88 = vmatpush1.bf16.msra.mxu0 0
    %89 = vmatprep.subr.bf16.mxu0 0
    %90 = vmatpush1.bf16.msra.mxu0 0
    %91 = vmatprep.subr.bf16.mxu0 0
    %92 = vmatpush1.bf16.msra.mxu0 0
    %93 = vmatprep.subr.bf16.mxu0 0
    %94 = vmatpush1.bf16.msra.mxu0 0
    %95 = vmatprep.subr.bf16.mxu0 0
    %96 = vmatpush1.bf16.msra.mxu0 0
    %97 = vmatprep.subr.bf16.mxu0 0
    %98 = vmatpush1.bf16.msra.mxu0 0
    %99 = vmatprep.subr.bf16.mxu0 0
    %100 = vmatpush1.bf16.msra.mxu0 0
    %101 = vmatprep.subr.bf16.mxu0 0
    %102 = vmatpush1.bf16.msra.mxu0 0
    %103 = vmatprep.subr.bf16.mxu0 0
    %104 = vmatpush1.bf16.msra.mxu0 0
    %105 = vmatprep.subr.bf16.mxu0 0
    %106 = vmatpush1.bf16.msra.mxu0 0
    %107 = vmatprep.mubr.bf16.mxu0 0
    %108 = vmatmul.mubr.bf16.gmra.mrb[0].mxu0 %v70
    %v109 = vpop.f32.mrb[0].mxu0
    %v110 = vadd.f32 %v55, %v109
    %v111 = vpop.f32.mrb[0].mxu0
    %v112 = vpop.f32.mrb[0].mxu0
    %v113 = vadd.f32 %v55, %v112
    %v114 = vpop.f32.mrb[0].mxu0
    %115 = vmatprep.mubr.bf16.mxu0 0
    %116 = vmatmul.mubr.bf16.gmra.mrb[0].mxu0 %v73
    %v117 = vpop.f32.mrb[0].mxu0
    %v118 = vadd.f32 %v55, %v117
    %v119 = vpop.f32.mrb[0].mxu0
    %v120 = vpop.f32.mrb[0].mxu0
    %v121 = vadd.f32 %v55, %v120
    %v122 = vpop.f32.mrb[0].mxu0
    %123 = vdwg.mxu0
    %v124 = vlaneseq
    %v125 = vshrl.u32 %v124, 7
    %v126 = vadd.s32 %v125, 8
    %v127 = vlaneseq
    %v128 = vand.u32 %v127, 127
    %v129 = vxor.u32 %v125, %v128
    %v130 = vxor.u32 %v126, %v128
    %v131 = vand.u32 %v129, 1
    %v132 = vand.u32 %v130, 1
    %vm133 = vcmp.eq.s32.totalorder %v131, 0
    %vm134 = vcmp.eq.s32.totalorder %v132, 0
    %v135 = vsel %vm133, 0.0, -1e+30
    %v136 = vsel %vm134, 0.0, -1e+30
    %v137 = vpack.c.bf16 %v113, %v110
    %v138 = vpack.c.bf16 %v121, %v118
    %140 = vrot.lane.b32.xlu0 %v137, 96
    %v141 = vpop.permute.xlu0 %140
    %vm142 = vcmask 64512
    %v144 = vsel %vm142, %v137, 0
    %v147 = vsel %vm142, %v141, 0
    %149 = vmatprep.subr.bf16.mxu0 0
    %150 = vmatpush1.bf16.xpose.msra.mxu0 %v147
    %151 = vmatprep.subr.bf16.mxu0 0
    %152 = vmatpush1.bf16.xpose.msra.mxu0 0
    %153 = vmatprep.subr.bf16.mxu0 0
    %154 = vmatpush1.bf16.xpose.msra.mxu0 0
    %155 = vmatprep.subr.bf16.mxu0 0
    %156 = vmatpush1.bf16.xpose.msra.mxu0 0
    %157 = vmatprep.subr.bf16.mxu0 0
    %158 = vmatpush1.bf16.xpose.msra.mxu0 0
    %159 = vmatprep.subr.bf16.mxu0 0
    %160 = vmatpush1.bf16.xpose.msra.mxu0 0
    %161 = vmatprep.subr.bf16.mxu0 0
    %162 = vmatpush1.bf16.xpose.msra.mxu0 0
    %163 = vmatprep.subr.bf16.mxu0 0
    %164 = vmatpush1.bf16.xpose.msra.mxu0 0
    %165 = vmatprep.subr.bf16.mxu0 0
    %166 = vmatpush1.bf16.xpose.msra.mxu0 0
    %167 = vmatprep.subr.bf16.mxu0 0
    %168 = vmatpush1.bf16.xpose.msra.mxu0 0
    %169 = vmatprep.subr.bf16.mxu0 0
    %170 = vmatpush1.bf16.xpose.msra.mxu0 0
    %171 = vmatprep.subr.bf16.mxu0 0
    %172 = vmatpush1.bf16.xpose.msra.mxu0 0
    %173 = vmatprep.subr.bf16.mxu0 0
    %174 = vmatpush1.bf16.xpose.msra.mxu0 0
    %175 = vmatprep.subr.bf16.mxu0 0
    %176 = vmatpush1.bf16.xpose.msra.mxu0 0
    %177 = vmatprep.subr.bf16.mxu0 0
    %178 = vmatpush1.bf16.xpose.msra.mxu0 0
    %179 = vmatprep.subr.bf16.mxu0 0
    %180 = vmatpush1.bf16.xpose.msra.mxu0 0
    %181 = vmatprep.mubr.bf16.mxu0 0
    %182 = vmatmul.mubr.bf16.gmra.mrb[0].mxu0 %v144
    %v183 = vpop.f32.mrb[0].mxu0
    %v184 = vadd.f32 %v135, %v183
    %v185 = vpop.f32.mrb[0].mxu0
    %v186 = vpop.f32.mrb[0].mxu0
    %v187 = vadd.f32 %v136, %v186
    %v188 = vpop.f32.mrb[0].mxu0
    %189 = vdwg.mxu0
    %vm190 = vcmask 130048
    %v191 = vsel %vm190, %v184, -inf
    %192 = vmax.xlane.f32.xlu0 %v191
    %v193 = vpop.xlane.xlu0 %192
    %v194 = vsel %vm190, %v187, -inf
    %195 = vmax.xlane.f32.xlu0 %v194
    %v196 = vpop.xlane.xlu0 %195
    %v197 = vsub.f32 %v184, %v193
    %v198 = vsub.f32 %v187, %v196
    %v199 = vmul.f32 %v197, 1.442695
    %v200 = vpow.pop %v199
    %v201 = vmul.f32 %v198, 1.442695
    %v202 = vpow.pop %v201
    %v203 = vsel %vm190, %v200, 0.0
    %204 = vadd.xlane.f32.xlu0 %v203
    %v205 = vpop.xlane.xlu0 %204
    %v206 = vsel %vm190, %v202, 0.0
    %207 = vadd.xlane.f32.xlu0 %v206
    %v208 = vpop.xlane.xlu0 %207
    %v209 = vrcp.pop %v205
    %v210 = vrcp.pop %v208
    %v211 = vmul.f32 %v200, %v209
    %v212 = vmul.f32 %v202, %v210
    %v213 = vpack.c.bf16 %v212, %v211
    %215 = vrot.lane.b32.xlu0 %v138, 64
    %v216 = vpop.permute.xlu0 %215
    %v219 = vsel %vm190, %v213, 0
    %221 = vmatprep.subr.bf16.mxu0 0
    %222 = vmatpush1.bf16.msra.mxu0 %v216
    %223 = vmatprep.subr.bf16.mxu0 0
    %224 = vmatpush1.bf16.msra.mxu0 0
    %225 = vmatprep.subr.bf16.mxu0 0
    %226 = vmatpush1.bf16.msra.mxu0 0
    %227 = vmatprep.subr.bf16.mxu0 0
    %228 = vmatpush1.bf16.msra.mxu0 0
    %229 = vmatprep.subr.bf16.mxu0 0
    %230 = vmatpush1.bf16.msra.mxu0 0
    %231 = vmatprep.subr.bf16.mxu0 0
    %232 = vmatpush1.bf16.msra.mxu0 0
    %233 = vmatprep.subr.bf16.mxu0 0
    %234 = vmatpush1.bf16.msra.mxu0 0
    %235 = vmatprep.subr.bf16.mxu0 0
    %236 = vmatpush1.bf16.msra.mxu0 0
    %237 = vmatprep.subr.bf16.mxu0 0
    %238 = vmatpush1.bf16.msra.mxu0 0
    %239 = vmatprep.subr.bf16.mxu0 0
    %240 = vmatpush1.bf16.msra.mxu0 0
    %241 = vmatprep.subr.bf16.mxu0 0
    %242 = vmatpush1.bf16.msra.mxu0 0
    %243 = vmatprep.subr.bf16.mxu0 0
    %244 = vmatpush1.bf16.msra.mxu0 0
    %245 = vmatprep.subr.bf16.mxu0 0
    %246 = vmatpush1.bf16.msra.mxu0 0
    %247 = vmatprep.subr.bf16.mxu0 0
    %248 = vmatpush1.bf16.msra.mxu0 0
    %249 = vmatprep.subr.bf16.mxu0 0
    %250 = vmatpush1.bf16.msra.mxu0 0
    %251 = vmatprep.subr.bf16.mxu0 0
    %252 = vmatpush1.bf16.msra.mxu0 0
    %253 = vmatprep.mubr.bf16.mxu0 0
    %254 = vmatmul.mubr.bf16.gmra.mrb[0].mxu0 %v219
    %v255 = vpop.f32.mrb[0].mxu0
    %v256 = vadd.f32 0.0, %v255
    %v257 = vpop.f32.mrb[0].mxu0
    %v258 = vpop.f32.mrb[0].mxu0
    %v259 = vadd.f32 0.0, %v258
    %v260 = vpop.f32.mrb[0].mxu0
    %261 = vdwg.mxu0
    %262 = vst.msk [vmem:[#allocation2] sm:$0xff] %vm142, %v256
    %263 = vst.msk [vmem:[#allocation2 + $0x8] sm:$0xff] %vm142, %v259
    %264 = vrot.lane.b32.xlu0 %v137, 120
    %v265 = vpop.permute.xlu0 %264
    %266 = vrot.lane.b32.xlu0 %v137, 88
    %v267 = vpop.permute.xlu0 %266
    %v269 = vsel %vm142, %v265, 0
    %v272 = vsel %vm142, %v267, 0
    %274 = vmatprep.subr.bf16.mxu0 0
    %275 = vmatpush1.bf16.xpose.msra.mxu0 %v272
    %276 = vmatprep.subr.bf16.mxu0 0
    %277 = vmatpush1.bf16.xpose.msra.mxu0 0
    %278 = vmatprep.subr.bf16.mxu0 0
    %279 = vmatpush1.bf16.xpose.msra.mxu0 0
    %280 = vmatprep.subr.bf16.mxu0 0
    %281 = vmatpush1.bf16.xpose.msra.mxu0 0
    %282 = vmatprep.subr.bf16.mxu0 0
    %283 = vmatpush1.bf16.xpose.msra.mxu0 0
    %284 = vmatprep.subr.bf16.mxu0 0
    %285 = vmatpush1.bf16.xpose.msra.mxu0 0
    %286 = vmatprep.subr.bf16.mxu0 0
    %287 = vmatpush1.bf16.xpose.msra.mxu0 0
    %288 = vmatprep.subr.bf16.mxu0 0
    %289 = vmatpush1.bf16.xpose.msra.mxu0 0
    %290 = vmatprep.subr.bf16.mxu0 0
    %291 = vmatpush1.bf16.xpose.msra.mxu0 0
    %292 = vmatprep.subr.bf16.mxu0 0
    %293 = vmatpush1.bf16.xpose.msra.mxu0 0
    %294 = vmatprep.subr.bf16.mxu0 0
    %295 = vmatpush1.bf16.xpose.msra.mxu0 0
    %296 = vmatprep.subr.bf16.mxu0 0
    %297 = vmatpush1.bf16.xpose.msra.mxu0 0
    %298 = vmatprep.subr.bf16.mxu0 0
    %299 = vmatpush1.bf16.xpose.msra.mxu0 0
    %300 = vmatprep.subr.bf16.mxu0 0
    %301 = vmatpush1.bf16.xpose.msra.mxu0 0
    %302 = vmatprep.subr.bf16.mxu0 0
    %303 = vmatpush1.bf16.xpose.msra.mxu0 0
    %304 = vmatprep.subr.bf16.mxu0 0
    %305 = vmatpush1.bf16.xpose.msra.mxu0 0
    %306 = vmatprep.mubr.bf16.mxu0 0
    %307 = vmatmul.mubr.bf16.gmra.mrb[0].mxu0 %v269
    %v308 = vpop.f32.mrb[0].mxu0
    %v309 = vadd.f32 %v135, %v308
    %v310 = vpop.f32.mrb[0].mxu0
    %v311 = vpop.f32.mrb[0].mxu0
    %v312 = vadd.f32 %v136, %v311
    %v313 = vpop.f32.mrb[0].mxu0
    %314 = vdwg.mxu0
    %v315 = vsel %vm190, %v309, -inf
    %316 = vmax.xlane.f32.xlu0 %v315
    %v317 = vpop.xlane.xlu0 %316
    %v318 = vsel %vm190, %v312, -inf
    %319 = vmax.xlane.f32.xlu0 %v318
    %v320 = vpop.xlane.xlu0 %319
    %v321 = vsub.f32 %v309, %v317
    %v322 = vsub.f32 %v312, %v320
    %v323 = vmul.f32 %v321, 1.442695
    %v324 = vpow.pop %v323
    %v325 = vmul.f32 %v322, 1.442695
    %v326 = vpow.pop %v325
    %v327 = vsel %vm190, %v324, 0.0
    %328 = vadd.xlane.f32.xlu0 %v327
    %v329 = vpop.xlane.xlu0 %328
    %v330 = vsel %vm190, %v326, 0.0
    %331 = vadd.xlane.f32.xlu0 %v330
    %v332 = vpop.xlane.xlu0 %331
    %v333 = vrcp.pop %v329
    %v334 = vrcp.pop %v332
    %v335 = vmul.f32 %v324, %v333
    %v336 = vmul.f32 %v326, %v334
    %v337 = vpack.c.bf16 %v336, %v335
    %338 = vrot.lane.b32.xlu0 %v138, 56
    %v339 = vpop.permute.xlu0 %338
    %v342 = vsel %vm190, %v337, 0
    %344 = vmatprep.subr.bf16.mxu0 0
    %345 = vmatpush1.bf16.msra.mxu0 %v339
    %346 = vmatprep.subr.bf16.mxu0 0
    %347 = vmatpush1.bf16.msra.mxu0 0
    %348 = vmatprep.subr.bf16.mxu0 0
    %349 = vmatpush1.bf16.msra.mxu0 0
    %350 = vmatprep.subr.bf16.mxu0 0
    %351 = vmatpush1.bf16.msra.mxu0 0
    %352 = vmatprep.subr.bf16.mxu0 0
    %353 = vmatpush1.bf16.msra.mxu0 0
    %354 = vmatprep.subr.bf16.mxu0 0
    %355 = vmatpush1.bf16.msra.mxu0 0
    %356 = vmatprep.subr.bf16.mxu0 0
    %357 = vmatpush1.bf16.msra.mxu0 0
    %358 = vmatprep.subr.bf16.mxu0 0
    %359 = vmatpush1.bf16.msra.mxu0 0
    %360 = vmatprep.subr.bf16.mxu0 0
    %361 = vmatpush1.bf16.msra.mxu0 0
    %362 = vmatprep.subr.bf16.mxu0 0
    %363 = vmatpush1.bf16.msra.mxu0 0
    %364 = vmatprep.subr.bf16.mxu0 0
    %365 = vmatpush1.bf16.msra.mxu0 0
    %366 = vmatprep.subr.bf16.mxu0 0
    %367 = vmatpush1.bf16.msra.mxu0 0
    %368 = vmatprep.subr.bf16.mxu0 0
    %369 = vmatpush1.bf16.msra.mxu0 0
    %370 = vmatprep.subr.bf16.mxu0 0
    %371 = vmatpush1.bf16.msra.mxu0 0
    %372 = vmatprep.subr.bf16.mxu0 0
    %373 = vmatpush1.bf16.msra.mxu0 0
    %374 = vmatprep.subr.bf16.mxu0 0
    %375 = vmatpush1.bf16.msra.mxu0 0
    %376 = vmatprep.mubr.bf16.mxu0 0
    %377 = vmatmul.mubr.bf16.gmra.mrb[0].mxu0 %v342
    %v378 = vpop.f32.mrb[0].mxu0
    %v379 = vadd.f32 0.0, %v378
    %v380 = vpop.f32.mrb[0].mxu0
    %v381 = vpop.f32.mrb[0].mxu0
    %v382 = vadd.f32 0.0, %v381
    %v383 = vpop.f32.mrb[0].mxu0
    %384 = vdwg.mxu0
    %387 = vrot.lane.b32.xlu0 %v379, 8
    %v388 = vpop.permute.xlu0 %387
    %389 = vrot.lane.b32.xlu0 %v382, 8
    %v390 = vpop.permute.xlu0 %389
    %vm393 = vcmask 130112
    %394 = vst.msk [vmem:[#allocation2] sm:$0xff] %vm393, %v388
    %395 = vst.msk [vmem:[#allocation2 + $0x8] sm:$0xff] %vm393, %v390
    %396 = vrot.lane.b32.xlu0 %v137, 112
    %v397 = vpop.permute.xlu0 %396
    %398 = vrot.lane.b32.xlu0 %v137, 80
    %v399 = vpop.permute.xlu0 %398
    %v401 = vsel %vm142, %v397, 0
    %v404 = vsel %vm142, %v399, 0
    %406 = vmatprep.subr.bf16.mxu0 0
    %407 = vmatpush1.bf16.xpose.msra.mxu0 %v404
    %408 = vmatprep.subr.bf16.mxu0 0
    %409 = vmatpush1.bf16.xpose.msra.mxu0 0
    %410 = vmatprep.subr.bf16.mxu0 0
    %411 = vmatpush1.bf16.xpose.msra.mxu0 0
    %412 = vmatprep.subr.bf16.mxu0 0
    %413 = vmatpush1.bf16.xpose.msra.mxu0 0
    %414 = vmatprep.subr.bf16.mxu0 0
    %415 = vmatpush1.bf16.xpose.msra.mxu0 0
    %416 = vmatprep.subr.bf16.mxu0 0
    %417 = vmatpush1.bf16.xpose.msra.mxu0 0
    %418 = vmatprep.subr.bf16.mxu0 0
    %419 = vmatpush1.bf16.xpose.msra.mxu0 0
    %420 = vmatprep.subr.bf16.mxu0 0
    %421 = vmatpush1.bf16.xpose.msra.mxu0 0
    %422 = vmatprep.subr.bf16.mxu0 0
    %423 = vmatpush1.bf16.xpose.msra.mxu0 0
    %424 = vmatprep.subr.bf16.mxu0 0
    %425 = vmatpush1.bf16.xpose.msra.mxu0 0
    %426 = vmatprep.subr.bf16.mxu0 0
    %427 = vmatpush1.bf16.xpose.msra.mxu0 0
    %428 = vmatprep.subr.bf16.mxu0 0
    %429 = vmatpush1.bf16.xpose.msra.mxu0 0
    %430 = vmatprep.subr.bf16.mxu0 0
    %431 = vmatpush1.bf16.xpose.msra.mxu0 0
    %432 = vmatprep.subr.bf16.mxu0 0
    %433 = vmatpush1.bf16.xpose.msra.mxu0 0
    %434 = vmatprep.subr.bf16.mxu0 0
    %435 = vmatpush1.bf16.xpose.msra.mxu0 0
    %436 = vmatprep.subr.bf16.mxu0 0
    %437 = vmatpush1.bf16.xpose.msra.mxu0 0
    %438 = vmatprep.mubr.bf16.mxu0 0
    %439 = vmatmul.mubr.bf16.gmra.mrb[0].mxu0 %v401
    %v440 = vpop.f32.mrb[0].mxu0
    %v441 = vadd.f32 %v135, %v440
    %v442 = vpop.f32.mrb[0].mxu0
    %v443 = vpop.f32.mrb[0].mxu0
    %v444 = vadd.f32 %v136, %v443
    %v445 = vpop.f32.mrb[0].mxu0
    %446 = vdwg.mxu0
    %v447 = vsel %vm190, %v441, -inf
    %448 = vmax.xlane.f32.xlu0 %v447
    %v449 = vpop.xlane.xlu0 %448
    %v450 = vsel %vm190, %v444, -inf
    %451 = vmax.xlane.f32.xlu0 %v450
    %v452 = vpop.xlane.xlu0 %451
    %v453 = vsub.f32 %v441, %v449
    %v454 = vsub.f32 %v444, %v452
    %v455 = vmul.f32 %v453, 1.442695
    %v456 = vpow.pop %v455
    %v457 = vmul.f32 %v454, 1.442695
    %v458 = vpow.pop %v457
    %v459 = vsel %vm190, %v456, 0.0
    %460 = vadd.xlane.f32.xlu0 %v459
    %v461 = vpop.xlane.xlu0 %460
    %v462 = vsel %vm190, %v458, 0.0
    %463 = vadd.xlane.f32.xlu0 %v462
    %v464 = vpop.xlane.xlu0 %463
    %v465 = vrcp.pop %v461
    %v466 = vrcp.pop %v464
    %v467 = vmul.f32 %v456, %v465
    %v468 = vmul.f32 %v458, %v466
    %v469 = vpack.c.bf16 %v468, %v467
    %470 = vrot.lane.b32.xlu0 %v138, 48
    %v471 = vpop.permute.xlu0 %470
    %v474 = vsel %vm190, %v469, 0
    %476 = vmatprep.subr.bf16.mxu0 0
    %477 = vmatpush1.bf16.msra.mxu0 %v471
    %478 = vmatprep.subr.bf16.mxu0 0
    %479 = vmatpush1.bf16.msra.mxu0 0
    %480 = vmatprep.subr.bf16.mxu0 0
    %481 = vmatpush1.bf16.msra.mxu0 0
    %482 = vmatprep.subr.bf16.mxu0 0
    %483 = vmatpush1.bf16.msra.mxu0 0
    %484 = vmatprep.subr.bf16.mxu0 0
    %485 = vmatpush1.bf16.msra.mxu0 0
    %486 = vmatprep.subr.bf16.mxu0 0
    %487 = vmatpush1.bf16.msra.mxu0 0
    %488 = vmatprep.subr.bf16.mxu0 0
    %489 = vmatpush1.bf16.msra.mxu0 0
    %490 = vmatprep.subr.bf16.mxu0 0
    %491 = vmatpush1.bf16.msra.mxu0 0
    %492 = vmatprep.subr.bf16.mxu0 0
    %493 = vmatpush1.bf16.msra.mxu0 0
    %494 = vmatprep.subr.bf16.mxu0 0
    %495 = vmatpush1.bf16.msra.mxu0 0
    %496 = vmatprep.subr.bf16.mxu0 0
    %497 = vmatpush1.bf16.msra.mxu0 0
    %498 = vmatprep.subr.bf16.mxu0 0
    %499 = vmatpush1.bf16.msra.mxu0 0
    %500 = vmatprep.subr.bf16.mxu0 0
    %501 = vmatpush1.bf16.msra.mxu0 0
    %502 = vmatprep.subr.bf16.mxu0 0
    %503 = vmatpush1.bf16.msra.mxu0 0
    %504 = vmatprep.subr.bf16.mxu0 0
    %505 = vmatpush1.bf16.msra.mxu0 0
    %506 = vmatprep.subr.bf16.mxu0 0
    %507 = vmatpush1.bf16.msra.mxu0 0
    %508 = vmatprep.mubr.bf16.mxu0 0
    %509 = vmatmul.mubr.bf16.gmra.mrb[0].mxu0 %v474
    %v510 = vpop.f32.mrb[0].mxu0
    %v511 = vadd.f32 0.0, %v510
    %v512 = vpop.f32.mrb[0].mxu0
    %v513 = vpop.f32.mrb[0].mxu0
    %v514 = vadd.f32 0.0, %v513
    %v515 = vpop.f32.mrb[0].mxu0
    %516 = vdwg.mxu0
    %519 = vrot.lane.b32.xlu0 %v511, 16
    %v520 = vpop.permute.xlu0 %519
    %521 = vrot.lane.b32.xlu0 %v514, 16
    %v522 = vpop.permute.xlu0 %521
    %vm525 = vcmask 195712
    %526 = vst.msk [vmem:[#allocation2] sm:$0xff] %vm525, %v520
    %527 = vst.msk [vmem:[#allocation2 + $0x8] sm:$0xff] %vm525, %v522
    %528 = vrot.lane.b32.xlu0 %v137, 104
    %v529 = vpop.permute.xlu0 %528
    %530 = vrot.lane.b32.xlu0 %v137, 72
    %v531 = vpop.permute.xlu0 %530
    %v533 = vsel %vm142, %v529, 0
    %v536 = vsel %vm142, %v531, 0
    %538 = vmatprep.subr.bf16.mxu0 0
    %539 = vmatpush1.bf16.xpose.msra.mxu0 %v536
    %540 = vmatprep.subr.bf16.mxu0 0
    %541 = vmatpush1.bf16.xpose.msra.mxu0 0
    %542 = vmatprep.subr.bf16.mxu0 0
    %543 = vmatpush1.bf16.xpose.msra.mxu0 0
    %544 = vmatprep.subr.bf16.mxu0 0
    %545 = vmatpush1.bf16.xpose.msra.mxu0 0
    %546 = vmatprep.subr.bf16.mxu0 0
    %547 = vmatpush1.bf16.xpose.msra.mxu0 0
    %548 = vmatprep.subr.bf16.mxu0 0
    %549 = vmatpush1.bf16.xpose.msra.mxu0 0
    %550 = vmatprep.subr.bf16.mxu0 0
    %551 = vmatpush1.bf16.xpose.msra.mxu0 0
    %552 = vmatprep.subr.bf16.mxu0 0
    %553 = vmatpush1.bf16.xpose.msra.mxu0 0
    %554 = vmatprep.subr.bf16.mxu0 0
    %555 = vmatpush1.bf16.xpose.msra.mxu0 0
    %556 = vmatprep.subr.bf16.mxu0 0
    %557 = vmatpush1.bf16.xpose.msra.mxu0 0
    %558 = vmatprep.subr.bf16.mxu0 0
    %559 = vmatpush1.bf16.xpose.msra.mxu0 0
    %560 = vmatprep.subr.bf16.mxu0 0
    %561 = vmatpush1.bf16.xpose.msra.mxu0 0
    %562 = vmatprep.subr.bf16.mxu0 0
    %563 = vmatpush1.bf16.xpose.msra.mxu0 0
    %564 = vmatprep.subr.bf16.mxu0 0
    %565 = vmatpush1.bf16.xpose.msra.mxu0 0
    %566 = vmatprep.subr.bf16.mxu0 0
    %567 = vmatpush1.bf16.xpose.msra.mxu0 0
    %568 = vmatprep.subr.bf16.mxu0 0
    %569 = vmatpush1.bf16.xpose.msra.mxu0 0
    %570 = vmatprep.mubr.bf16.mxu0 0
    %571 = vmatmul.mubr.bf16.gmra.mrb[0].mxu0 %v533
    %v572 = vpop.f32.mrb[0].mxu0
    %v573 = vadd.f32 %v135, %v572
    %v574 = vpop.f32.mrb[0].mxu0
    %v575 = vpop.f32.mrb[0].mxu0
    %v576 = vadd.f32 %v136, %v575
    %v577 = vpop.f32.mrb[0].mxu0
    %578 = vdwg.mxu0
    %v579 = vsel %vm190, %v573, -inf
    %580 = vmax.xlane.f32.xlu0 %v579
    %v581 = vpop.xlane.xlu0 %580
    %v582 = vsel %vm190, %v576, -inf
    %583 = vmax.xlane.f32.xlu0 %v582
    %v584 = vpop.xlane.xlu0 %583
    %v585 = vsub.f32 %v573, %v581
    %v586 = vsub.f32 %v576, %v584
    %v587 = vmul.f32 %v585, 1.442695
    %v588 = vpow.pop %v587
    %v589 = vmul.f32 %v586, 1.442695
    %v590 = vpow.pop %v589
    %v591 = vsel %vm190, %v588, 0.0
    %592 = vadd.xlane.f32.xlu0 %v591
    %v593 = vpop.xlane.xlu0 %592
    %v594 = vsel %vm190, %v590, 0.0
    %595 = vadd.xlane.f32.xlu0 %v594
    %v596 = vpop.xlane.xlu0 %595
    %v597 = vrcp.pop %v593
    %v598 = vrcp.pop %v596
    %v599 = vmul.f32 %v588, %v597
    %v600 = vmul.f32 %v590, %v598
    %v601 = vpack.c.bf16 %v600, %v599
    %602 = vrot.lane.b32.xlu0 %v138, 40
    %v603 = vpop.permute.xlu0 %602
    %v606 = vsel %vm190, %v601, 0
    %608 = vmatprep.subr.bf16.mxu0 0
    %609 = vmatpush1.bf16.msra.mxu0 %v603
    %610 = vmatprep.subr.bf16.mxu0 0
    %611 = vmatpush1.bf16.msra.mxu0 0
    %612 = vmatprep.subr.bf16.mxu0 0
    %613 = vmatpush1.bf16.msra.mxu0 0
    %614 = vmatprep.subr.bf16.mxu0 0
    %615 = vmatpush1.bf16.msra.mxu0 0
    %616 = vmatprep.subr.bf16.mxu0 0
    %617 = vmatpush1.bf16.msra.mxu0 0
    %618 = vmatprep.subr.bf16.mxu0 0
    %619 = vmatpush1.bf16.msra.mxu0 0
    %620 = vmatprep.subr.bf16.mxu0 0
    %621 = vmatpush1.bf16.msra.mxu0 0
    %622 = vmatprep.subr.bf16.mxu0 0
    %623 = vmatpush1.bf16.msra.mxu0 0
    %624 = vmatprep.subr.bf16.mxu0 0
    %625 = vmatpush1.bf16.msra.mxu0 0
    %626 = vmatprep.subr.bf16.mxu0 0
    %627 = vmatpush1.bf16.msra.mxu0 0
    %628 = vmatprep.subr.bf16.mxu0 0
    %629 = vmatpush1.bf16.msra.mxu0 0
    %630 = vmatprep.subr.bf16.mxu0 0
    %631 = vmatpush1.bf16.msra.mxu0 0
    %632 = vmatprep.subr.bf16.mxu0 0
    %633 = vmatpush1.bf16.msra.mxu0 0
    %634 = vmatprep.subr.bf16.mxu0 0
    %635 = vmatpush1.bf16.msra.mxu0 0
    %636 = vmatprep.subr.bf16.mxu0 0
    %637 = vmatpush1.bf16.msra.mxu0 0
    %638 = vmatprep.subr.bf16.mxu0 0
    %639 = vmatpush1.bf16.msra.mxu0 0
    %640 = vmatprep.mubr.bf16.mxu0 0
    %641 = vmatmul.mubr.bf16.gmra.mrb[0].mxu0 %v606
    %v642 = vpop.f32.mrb[0].mxu0
    %v643 = vadd.f32 0.0, %v642
    %v644 = vpop.f32.mrb[0].mxu0
    %v645 = vpop.f32.mrb[0].mxu0
    %v646 = vadd.f32 0.0, %v645
    %v647 = vpop.f32.mrb[0].mxu0
    %648 = vdwg.mxu0
    %651 = vrot.lane.b32.xlu0 %v643, 24
    %v652 = vpop.permute.xlu0 %651
    %653 = vrot.lane.b32.xlu0 %v646, 24
    %v654 = vpop.permute.xlu0 %653
    %vm657 = vcmask 261312
    %658 = vst.msk [vmem:[#allocation2] sm:$0xff] %vm657, %v652
    %659 = vst.msk [vmem:[#allocation2 + $0x8] sm:$0xff] %vm657, %v654
    %v660 = vld [vmem:[#allocation2] sm:$0xff]
    %v661 = vld [vmem:[#allocation2 + $0x8] sm:$0xff]
    %v662 = vpack.c.bf16 %v661, %v660
    %v663 = vlaneseq
    %v664 = vshrl.u32 %v663, 7
    %v665 = vsub.s32 2, %v664
    %v666 = vrot.slane %v45, %v665
    %667 = vrot.lane.b32.xlu0 %v64, 32
    %v668 = vpop.permute.xlu0 %667
    %669 = vrot.lane.b32.xlu0 %v65, 32
    %v670 = vpop.permute.xlu0 %669
    %v674 = vsel %vm68, %v662, 0
    %676 = vmatprep.subr.bf16.mxu0 0
    %677 = vmatpush1.bf16.msra.mxu0 %v668
    %678 = vmatprep.subr.bf16.mxu0 0
    %679 = vmatpush1.bf16.msra.mxu0 %v670
    %680 = vmatprep.subr.bf16.mxu0 0
    %681 = vmatpush1.bf16.msra.mxu0 0
    %682 = vmatprep.subr.bf16.mxu0 0
    %683 = vmatpush1.bf16.msra.mxu0 0
    %684 = vmatprep.subr.bf16.mxu0 0
    %685 = vmatpush1.bf16.msra.mxu0 0
    %686 = vmatprep.subr.bf16.mxu0 0
    %687 = vmatpush1.bf16.msra.mxu0 0
    %688 = vmatprep.subr.bf16.mxu0 0
    %689 = vmatpush1.bf16.msra.mxu0 0
    %690 = vmatprep.subr.bf16.mxu0 0
    %691 = vmatpush1.bf16.msra.mxu0 0
    %692 = vmatprep.subr.bf16.mxu0 0
    %693 = vmatpush1.bf16.msra.mxu0 0
    %694 = vmatprep.subr.bf16.mxu0 0
    %695 = vmatpush1.bf16.msra.mxu0 0
    %696 = vmatprep.subr.bf16.mxu0 0
    %697 = vmatpush1.bf16.msra.mxu0 0
    %698 = vmatprep.subr.bf16.mxu0 0
    %699 = vmatpush1.bf16.msra.mxu0 0
    %700 = vmatprep.subr.bf16.mxu0 0
    %701 = vmatpush1.bf16.msra.mxu0 0
    %702 = vmatprep.subr.bf16.mxu0 0
    %703 = vmatpush1.bf16.msra.mxu0 0
    %704 = vmatprep.subr.bf16.mxu0 0
    %705 = vmatpush1.bf16.msra.mxu0 0
    %706 = vmatprep.subr.bf16.mxu0 0
    %707 = vmatpush1.bf16.msra.mxu0 0
    %708 = vmatprep.mubr.bf16.mxu0 0
    %709 = vmatmul.mubr.bf16.gmra.mrb[0].mxu0 %v674
    %v710 = vpop.f32.mrb[0].mxu0
    %v711 = vadd.f32 %v666, %v710
    %v712 = vpop.f32.mrb[0].mxu0
    %v713 = vpop.f32.mrb[0].mxu0
    %v714 = vadd.f32 %v666, %v713
    %v715 = vpop.f32.mrb[0].mxu0
    %716 = vdwg.mxu0
    %v717 = vadd.f32 %v39, %v711
    %v718 = vadd.f32 %v40, %v714
    %v719 = vsel %vm68, %v717, 0.0
    %720 = vadd.xlane.f32.xlu0 %v719
    %v721 = vpop.xlane.xlu0 %720
    %v722 = vsel %vm68, %v718, 0.0
    %723 = vadd.xlane.f32.xlu0 %v722
    %v724 = vpop.xlane.xlu0 %723
    %v725 = vrcp.pop 32.0
    %v726 = vmul.f32 %v721, %v725
    %v727 = vmul.f32 %v724, %v725
    %v728 = vsub.f32 %v717, %v726
    %v729 = vsub.f32 %v718, %v727
    %v730 = vmul.f32 %v728, %v728
    %v731 = vmul.f32 %v729, %v729
    %v732 = vsel %vm68, %v730, 0.0
    %733 = vadd.xlane.f32.xlu0 %v732
    %v734 = vpop.xlane.xlu0 %733
    %v735 = vsel %vm68, %v731, 0.0
    %736 = vadd.xlane.f32.xlu0 %v735
    %v737 = vpop.xlane.xlu0 %736
    %v738 = vmul.f32 %v734, %v725
    %v739 = vmul.f32 %v737, %v725
    %v740 = vadd.f32 %v738, 1e-05
    %v741 = vadd.f32 %v739, 1e-05
    %v742 = vrsqrt.pop %v740
    %v743 = vrsqrt.pop %v741
    %v744 = vmul.f32 %v728, %v742
    %v745 = vmul.f32 %v729, %v743
    %v746 = vlaneseq
    %v747 = vshrl.u32 %v746, 7
    %v748 = vsub.s32 4, %v747
    %v749 = vrot.slane %v45, %v748
    %v750 = vmul.f32 %v744, %v749
    %v751 = vmul.f32 %v745, %v749
    %v752 = vlaneseq
    %v753 = vshrl.u32 %v752, 7
    %v754 = vsub.s32 5, %v753
    %v755 = vrot.slane %v45, %v754
    %v756 = vadd.f32 %v750, %v755
    %v757 = vadd.f32 %v751, %v755
    %v758 = vpack.c.bf16 %v757, %v756
    %v759 = vld [vmem:[#allocation3] sm:$0xf]
    %v760 = vld [vmem:[#allocation3 + $0x4] sm:$0xf]
    %v761 = vld [vmem:[#allocation3 + $0x8] sm:$0xf]
    %v762 = vld [vmem:[#allocation3 + $0xc] sm:$0xf]
    %v763 = vlaneseq
    %v764 = vshrl.u32 %v763, 7
    %v765 = vsub.s32 1, %v764
    %v766 = vrot.slane %v45, %v765
    %v771 = vunpack.c.l.b16 %v759
    %v772 = vunpack.c.l.b16 %v760
    %v773 = vunpack.c.l.b16 %v761
    %v774 = vunpack.c.l.b16 %v762
    %v775 = vpack.c.b16 %v772, %v771
    %v776 = vpack.c.b16 %v774, %v773
    %v780 = vsel %vm68, %v758, 0
    %782 = vmatprep.subr.bf16.mxu0 0
    %783 = vmatpush1.bf16.msra.mxu0 %v775
    %784 = vmatprep.subr.bf16.mxu0 0
    %785 = vmatpush1.bf16.msra.mxu0 %v776
    %786 = vmatprep.subr.bf16.mxu0 0
    %787 = vmatpush1.bf16.msra.mxu0 0
    %788 = vmatprep.subr.bf16.mxu0 0
    %789 = vmatpush1.bf16.msra.mxu0 0
    %790 = vmatprep.subr.bf16.mxu0 0
    %791 = vmatpush1.bf16.msra.mxu0 0
    %792 = vmatprep.subr.bf16.mxu0 0
    %793 = vmatpush1.bf16.msra.mxu0 0
    %794 = vmatprep.subr.bf16.mxu0 0
    %795 = vmatpush1.bf16.msra.mxu0 0
    %796 = vmatprep.subr.bf16.mxu0 0
    %797 = vmatpush1.bf16.msra.mxu0 0
    %798 = vmatprep.subr.bf16.mxu0 0
    %799 = vmatpush1.bf16.msra.mxu0 0
    %800 = vmatprep.subr.bf16.mxu0 0
    %801 = vmatpush1.bf16.msra.mxu0 0
    %802 = vmatprep.subr.bf16.mxu0 0
    %803 = vmatpush1.bf16.msra.mxu0 0
    %804 = vmatprep.subr.bf16.mxu0 0
    %805 = vmatpush1.bf16.msra.mxu0 0
    %806 = vmatprep.subr.bf16.mxu0 0
    %807 = vmatpush1.bf16.msra.mxu0 0
    %808 = vmatprep.subr.bf16.mxu0 0
    %809 = vmatpush1.bf16.msra.mxu0 0
    %810 = vmatprep.subr.bf16.mxu0 0
    %811 = vmatpush1.bf16.msra.mxu0 0
    %812 = vmatprep.subr.bf16.mxu0 0
    %813 = vmatpush1.bf16.msra.mxu0 0
    %814 = vmatprep.mubr.bf16.mxu0 0
    %815 = vmatmul.mubr.bf16.gmra.mrb[0].mxu0 %v780
    %v816 = vpop.f32.mrb[0].mxu0
    %v817 = vadd.f32 %v766, %v816
    %v818 = vpop.f32.mrb[0].mxu0
    %v819 = vpop.f32.mrb[0].mxu0
    %v820 = vadd.f32 %v766, %v819
    %v821 = vpop.f32.mrb[0].mxu0
    %822 = vdwg.mxu0
    %v823 = vmax.f32 %v817, 0.0
    %v824 = vmax.f32 %v820, 0.0
    %v825 = vpack.c.bf16 %v824, %v823
    %v826 = vld [vmem:[%s4] sm:$0xf]
    %v827 = vld [vmem:[%s4 + $0x4] sm:$0xf]
    %v828 = vld [vmem:[%s4 + $0x8] sm:$0xf]
    %v829 = vld [vmem:[%s4 + $0xc] sm:$0xf]
    %v830 = vld [vmem:[%s4 + $0x10] sm:$0xf]
    %v831 = vld [vmem:[%s4 + $0x14] sm:$0xf]
    %v832 = vld [vmem:[%s4 + $0x18] sm:$0xf]
    %v833 = vld [vmem:[%s4 + $0x1c] sm:$0xf]
    %v834 = vlaneseq
    %v835 = vshrl.u32 %v834, 7
    %v836 = vsub.s32 3, %v835
    %v837 = vrot.slane %v45, %v836
    %v846 = vunpack.c.l.b16 %v826
    %v847 = vunpack.c.l.b16 %v827
    %v848 = vunpack.c.l.b16 %v828
    %v849 = vunpack.c.l.b16 %v829
    %v850 = vunpack.c.l.b16 %v830
    %v851 = vunpack.c.l.b16 %v831
    %v852 = vunpack.c.l.b16 %v832
    %v853 = vunpack.c.l.b16 %v833
    %v854 = vpack.c.b16 %v847, %v846
    %v855 = vpack.c.b16 %v849, %v848
    %v856 = vpack.c.b16 %v851, %v850
    %v857 = vpack.c.b16 %v853, %v852
    %vm862 = vcmask 523264
    %v864 = vsel %vm862, %v825, 0
    %866 = vmatprep.subr.bf16.mxu0 0
    %867 = vmatpush1.bf16.msra.mxu0 %v854
    %868 = vmatprep.subr.bf16.mxu0 0
    %869 = vmatpush1.bf16.msra.mxu0 %v855
    %870 = vmatprep.subr.bf16.mxu0 0
    %871 = vmatpush1.bf16.msra.mxu0 %v856
    %872 = vmatprep.subr.bf16.mxu0 0
    %873 = vmatpush1.bf16.msra.mxu0 %v857
    %874 = vmatprep.subr.bf16.mxu0 0
    %875 = vmatpush1.bf16.msra.mxu0 0
    %876 = vmatprep.subr.bf16.mxu0 0
    %877 = vmatpush1.bf16.msra.mxu0 0
    %878 = vmatprep.subr.bf16.mxu0 0
    %879 = vmatpush1.bf16.msra.mxu0 0
    %880 = vmatprep.subr.bf16.mxu0 0
    %881 = vmatpush1.bf16.msra.mxu0 0
    %882 = vmatprep.subr.bf16.mxu0 0
    %883 = vmatpush1.bf16.msra.mxu0 0
    %884 = vmatprep.subr.bf16.mxu0 0
    %885 = vmatpush1.bf16.msra.mxu0 0
    %886 = vmatprep.subr.bf16.mxu0 0
    %887 = vmatpush1.bf16.msra.mxu0 0
    %888 = vmatprep.subr.bf16.mxu0 0
    %889 = vmatpush1.bf16.msra.mxu0 0
    %890 = vmatprep.subr.bf16.mxu0 0
    %891 = vmatpush1.bf16.msra.mxu0 0
    %892 = vmatprep.subr.bf16.mxu0 0
    %893 = vmatpush1.bf16.msra.mxu0 0
    %894 = vmatprep.subr.bf16.mxu0 0
    %895 = vmatpush1.bf16.msra.mxu0 0
    %896 = vmatprep.subr.bf16.mxu0 0
    %897 = vmatpush1.bf16.msra.mxu0 0
    %898 = vmatprep.mubr.bf16.mxu0 0
    %899 = vmatmul.mubr.bf16.gmra.mrb[0].mxu0 %v864
    %v900 = vpop.f32.mrb[0].mxu0
    %v901 = vadd.f32 %v837, %v900
    %v902 = vpop.f32.mrb[0].mxu0
    %v903 = vpop.f32.mrb[0].mxu0
    %v904 = vadd.f32 %v837, %v903
    %v905 = vpop.f32.mrb[0].mxu0
    %906 = vdwg.mxu0
    %v907 = vadd.f32 %v756, %v901
    %v908 = vadd.f32 %v757, %v904
    %v909 = vsel %vm68, %v907, 0.0
    %910 = vadd.xlane.f32.xlu0 %v909
    %v911 = vpop.xlane.xlu0 %910
    %v912 = vsel %vm68, %v908, 0.0
    %913 = vadd.xlane.f32.xlu0 %v912
    %v914 = vpop.xlane.xlu0 %913
    %v915 = vmul.f32 %v911, %v725
    %v916 = vmul.f32 %v914, %v725
    %v917 = vsub.f32 %v907, %v915
    %v918 = vsub.f32 %v908, %v916
    %v919 = vmul.f32 %v917, %v917
    %v920 = vmul.f32 %v918, %v918
    %v921 = vsel %vm68, %v919, 0.0
    %922 = vadd.xlane.f32.xlu0 %v921
    %v923 = vpop.xlane.xlu0 %922
    %v924 = vsel %vm68, %v920, 0.0
    %925 = vadd.xlane.f32.xlu0 %v924
    %v926 = vpop.xlane.xlu0 %925
    %v927 = vmul.f32 %v923, %v725
    %v928 = vmul.f32 %v926, %v725
    %v929 = vadd.f32 %v927, 1e-05
    %v930 = vadd.f32 %v928, 1e-05
    %v931 = vrsqrt.pop %v929
    %v932 = vrsqrt.pop %v930
    %v933 = vmul.f32 %v917, %v931
    %v934 = vmul.f32 %v918, %v932
    %v935 = vlaneseq
    %v936 = vshrl.u32 %v935, 7
    %v937 = vsub.s32 6, %v936
    %v938 = vrot.slane %v45, %v937
    %v939 = vmul.f32 %v933, %v938
    %v940 = vmul.f32 %v934, %v938
    %v941 = vlaneseq
    %v942 = vshrl.u32 %v941, 7
    %v943 = vsub.s32 7, %v942
    %v944 = vrot.slane %v45, %v943
    %v945 = vadd.f32 %v939, %v944
    %v946 = vadd.f32 %v940, %v944
    %947 = vst.msk [vmem:[#allocation6] sm:$0xff] %vm68, %v945
    %948 = vst.msk [vmem:[#allocation6 + $0x8] sm:$0xff] %vm68, %v946
    // Predicated region
    $region30: #{transformer_encoder_layer.1} parent=1 // pred_check
      _
    $region31: #{transformer_encoder_layer.1} parent=1 // pred_check_branch
      %950 = sbr.rel (0) target = $region33
    $region32: #{transformer_encoder_layer.1} parent=1 // pred_region
      %s952 = ssub.s32 256, 256
      %953 = vsyncadd [#allocation5], %s952
      %s954 = sshll.u32 [#allocation6], 4
      %s955 = int_to_ptr.vmem [resolvable:$true] %s954
      %960 = dma.vmem_to_hbm [thread:$0]  %s955, 256, %s6, [#allocation5], 128, 128, 8
    $region33: #{transformer_encoder_layer.1} parent=1 // pred_fallthru
      _
    // Predicated region
    $region34: #{transformer_encoder_layer.1} parent=1 // pred_check
      _
    $region35: #{transformer_encoder_layer.1} parent=1 // pred_check_branch
      %962 = sbr.rel (0) target = $region37
    $region36: #{transformer_encoder_layer.1} parent=1 // pred_region
      %963 = dma.done [#allocation5], 256
    $region37: #{transformer_encoder_layer.1} parent=1 // pred_fallthru
      _
    %964 = vsyncpa [#allocation4], 1
    %965 = vsyncpa [#allocation5], 1

</llo_original>
